<compile_context>
chip_gen: v5e
topology: v5e:2x2
jax: 0.10.0
libtpu: 0.0.40
codegen_flags: <defaults>
</compile_context>

<pallas_src>
import jax
import jax.numpy as jnp
from jax.experimental import pallas as pl
from jax.experimental.pallas import tpu as pltpu

LN_EPS = 1e-6


def sent_pos_encoder_kernel(x_ref, pos_ref, gamma_ref, beta_ref, o_ref):
    # x_ref    : (R, H) VMEM -- flattened (batch*sent) rows of element embeddings
    # pos_ref  : (R, H) VMEM -- pre-gathered, pre-tiled position embeddings
    # gamma_ref: (1, H) VMEM -- LayerNorm a_2
    # beta_ref : (1, H) VMEM -- LayerNorm b_2
    # o_ref    : (R, H) VMEM
    h = x_ref.shape[-1]

    # Upcast to f32 inside the kernel; HBM traffic stays in the caller dtype.
    y = x_ref[...].astype(jnp.float32) + pos_ref[...].astype(jnp.float32)

    # LayerNorm (annotated-transformer / DEE style): unbiased std (N-1), eps on std.
    mean = jnp.mean(y, axis=-1, keepdims=True)
    diff = y - mean
    var = jnp.sum(diff * diff, axis=-1, keepdims=True) * jnp.float32(1.0 / (h - 1))
    std = jnp.sqrt(var)
    # Exact divide: the approx reciprocal broke 1e-4 parity with the reference.
    norm = diff / (std + jnp.float32(LN_EPS))
    out = gamma_ref[...].astype(jnp.float32) * norm + beta_ref[...].astype(jnp.float32)

    # TODO(synk): dropout is identity here (eval mode); training-mode dropout would
    # need pltpu.prng_seed + pltpu.prng_random_bits with an explicit seed input.
    o_ref[...] = out.astype(o_ref.dtype)


def _batches_per_block(B, S, H, itemsize, budget_bytes):
    """How many batch rows (k) go into one (k*S, H) tile.

    * tile stays under ~budget_bytes (default 2 MiB: on the HBM-roofline plateau
      and comfortably inside v5e's 16 MiB default scoped VMEM once double-buffered)
    * grid keeps >= 2 steps when B >= 2 so v7x can use both TensorCores
    * best effort: make k*S a multiple of 8 so the row axis is sublane-aligned
    """
    per_batch = S * H * itemsize
    k = max(1, min(B, budget_bytes // max(per_batch, 1)))
    if B >= 2:
        k = min(k, -(-B // 2))  # ceil(B/2): at least two grid steps
    if (k * S) % 8 != 0:
        for cand in range(k, 0, -1):
            if (cand * S) % 8 == 0:
                k = cand
                break
    return k


def sentence_pos_encoder(batch_elem_emb, emb_table, gamma, beta, sent_pos_ids=None,
                         tile_budget_bytes=2 << 20):
    """batch_elem_emb: (B, S, H); emb_table: (MAX, H); gamma/beta: (H,)."""
    B, S, H = batch_elem_emb.shape
    dtype = batch_elem_emb.dtype
    itemsize = jnp.dtype(dtype).itemsize

    if sent_pos_ids is None:
        sent_pos_ids = jnp.arange(S, dtype=jnp.int32)
    else:
        sent_pos_ids = jnp.asarray(sent_pos_ids, dtype=jnp.int32)

    # Hoisted embedding gather: done once here instead of per-grid-step in-kernel.
    pos_emb = jnp.take(emb_table, sent_pos_ids, axis=0).astype(dtype)  # (S, H)

    k = _batches_per_block(B, S, H, itemsize, tile_budget_bytes)
    rows_per_block = k * S
    num_blocks = pl.cdiv(B, k)          # tail block is padded-read / masked-write
    total_rows = B * S

    x2d = batch_elem_emb.reshape(total_rows, H)
    pos_tiled = jnp.tile(pos_emb, (k, 1))                              # (k*S, H)
    gamma2d = jnp.reshape(gamma, (1, H)).astype(dtype)
    beta2d = jnp.reshape(beta, (1, H)).astype(dtype)

    # Explicit VMEM contract: 2x double-buffering for x / pos / out tiles
    # plus constants, with ~25% headroom (safe on v5e 16 MiB scoped, v7x 64 MiB/TC).
    tile_bytes = rows_per_block * H * itemsize
    vmem_bytes = max(int(1.25 * (2 * 3 * tile_bytes + 4 * H * itemsize)), 4 << 20)

    cost = pl.CostEstimate(
        flops=8 * total_rows * H,
        transcendentals=total_rows,                                   # one sqrt per row
        bytes_accessed=(2 * total_rows * H + rows_per_block * H + 2 * H) * itemsize,
    )

    out2d = pl.pallas_call(
        sent_pos_encoder_kernel,
        out_shape=jax.ShapeDtypeStruct((total_rows, H), dtype),
        grid_spec=pltpu.PrefetchScalarGridSpec(
            num_scalar_prefetch=0,
            grid=(num_blocks,),
            in_specs=[
                pl.BlockSpec((rows_per_block, H), lambda i: (i, 0)),  # x rows
                pl.BlockSpec((rows_per_block, H), lambda i: (0, 0)),  # tiled pos emb
                pl.BlockSpec((1, H), lambda i: (0, 0)),               # gamma
                pl.BlockSpec((1, H), lambda i: (0, 0)),               # beta
            ],
            out_specs=pl.BlockSpec((rows_per_block, H), lambda i: (i, 0)),
        ),
        compiler_params=pltpu.CompilerParams(
            dimension_semantics=("parallel",),   # shards row blocks across v7x's 2 TCs
            vmem_limit_bytes=vmem_bytes,
        ),
        cost_estimate=cost,
    )(x2d, pos_tiled, gamma2d, beta2d)

    return out2d.reshape(B, S, H)


def _reference(batch_elem_emb, emb_table, gamma, beta, sent_pos_ids):
    pos = emb_table[sent_pos_ids]                 # (S, H)
    y = batch_elem_emb + pos
    mean = jnp.mean(y, axis=-1, keepdims=True)
    diff = y - mean
    H = y.shape[-1]
    std = jnp.sqrt(jnp.sum(diff * diff, axis=-1, keepdims=True) / (H - 1))
    return gamma * diff / (std + LN_EPS) + beta


if __name__ == "__main__":
    key = jax.random.PRNGKey(0)
    B, S, H = 2, 8, 32
    MAX_SENT_NUM = 100

    k1, k2 = jax.random.split(key)
    # Parameters: Embedding weight ~ N(0,1) (torch default); LayerNorm a_2=1, b_2=0.
    emb_table = jax.random.normal(k1, (MAX_SENT_NUM, H), dtype=jnp.float32)
    gamma = jnp.ones((H,), dtype=jnp.float32)
    beta = jnp.zeros((H,), dtype=jnp.float32)

    # Input batch of sentence embeddings.
    x = jax.random.normal(k2, (B, S, H), dtype=jnp.float32)

    out = sentence_pos_encoder(x, emb_table, gamma, beta, sent_pos_ids=None)
    out = jax.block_until_ready(out)

    ref = _reference(x, emb_table, gamma, beta, jnp.arange(S, dtype=jnp.int32))
    assert out.shape == (B, S, H)
    assert out.dtype == x.dtype
    assert jnp.allclose(out, ref, atol=1e-4, rtol=1e-4), "mismatch vs reference"

    print("KERNEL_OK")
</pallas_src>

<mosaic_0001>
module attributes {stable_mosaic.version = 11 : i64} {
  func.func @sent_pos_encoder_kernel(%arg0: i32, %arg1: memref<8x32xf32, #tpu.memory_space<vmem>>, %arg2: memref<8x32xf32, #tpu.memory_space<vmem>>, %arg3: memref<1x32xf32, #tpu.memory_space<vmem>>, %arg4: memref<1x32xf32, #tpu.memory_space<vmem>>, %arg5: memref<8x32xf32, #tpu.memory_space<vmem>>) attributes {dimension_semantics = [#tpu.dimension_semantics<parallel>], iteration_bounds = array<i64: 2>, scalar_prefetch = 0 : i64, scratch_operands = 0 : i64, tpu.core_type = #tpu.core_type<tc>, window_params = [{transform_indices = @transform_0, window_bounds = array<i64: 8, 32>}, {pipeline_mode = #tpu.pipeline_mode<synchronous>, transform_indices = @transform_1, window_bounds = array<i64: 8, 32>}, {pipeline_mode = #tpu.pipeline_mode<synchronous>, transform_indices = @transform_2, window_bounds = array<i64: 1, 32>}, {pipeline_mode = #tpu.pipeline_mode<synchronous>, transform_indices = @transform_3, window_bounds = array<i64: 1, 32>}, {transform_indices = @transform_4, window_bounds = array<i64: 8, 32>}]} {
    %c0 = arith.constant 0 : index
    %c0_0 = arith.constant 0 : index
    %0 = vector.load %arg1[%c0, %c0_0] : memref<8x32xf32, #tpu.memory_space<vmem>>, vector<8x32xf32>
    %c0_1 = arith.constant 0 : index
    %c0_2 = arith.constant 0 : index
    %1 = vector.load %arg2[%c0_1, %c0_2] : memref<8x32xf32, #tpu.memory_space<vmem>>, vector<8x32xf32>
    %2 = arith.addf %0, %1 : vector<8x32xf32>
    %cst = arith.constant dense<0.000000e+00> : vector<8xf32>
    %3 = vector.multi_reduction <add>, %2, %cst [1] : vector<8x32xf32> to vector<8xf32>
    %4 = vector.shape_cast %3 : vector<8xf32> to vector<8x1xf32>
    %cst_3 = arith.constant 3.200000e+01 : f32
    %5 = vector.broadcast %cst_3 : f32 to vector<8x1xf32>
    %6 = arith.divf %4, %5 : vector<8x1xf32>
    %7 = vector.broadcast %6 : vector<8x1xf32> to vector<8x32xf32>
    %8 = arith.subf %2, %7 : vector<8x32xf32>
    %9 = arith.mulf %8, %8 : vector<8x32xf32>
    %cst_4 = arith.constant dense<0.000000e+00> : vector<8xf32>
    %10 = vector.multi_reduction <add>, %9, %cst_4 [1] : vector<8x32xf32> to vector<8xf32>
    %11 = vector.shape_cast %10 : vector<8xf32> to vector<8x1xf32>
    %cst_5 = arith.constant 0.0322580636 : f32
    %12 = vector.broadcast %cst_5 : f32 to vector<8x1xf32>
    %13 = arith.mulf %11, %12 : vector<8x1xf32>
    %14 = math.sqrt %13 : vector<8x1xf32>
    %cst_6 = arith.constant 9.99999997E-7 : f32
    %15 = vector.broadcast %cst_6 : f32 to vector<8x1xf32>
    %16 = arith.addf %14, %15 : vector<8x1xf32>
    %17 = vector.broadcast %16 : vector<8x1xf32> to vector<8x32xf32>
    %18 = arith.divf %8, %17 : vector<8x32xf32>
    %c0_7 = arith.constant 0 : index
    %c0_8 = arith.constant 0 : index
    %19 = vector.load %arg3[%c0_7, %c0_8] : memref<1x32xf32, #tpu.memory_space<vmem>>, vector<1x32xf32>
    %20 = vector.broadcast %19 : vector<1x32xf32> to vector<8x32xf32>
    %21 = arith.mulf %20, %18 : vector<8x32xf32>
    %c0_9 = arith.constant 0 : index
    %c0_10 = arith.constant 0 : index
    %22 = vector.load %arg4[%c0_9, %c0_10] : memref<1x32xf32, #tpu.memory_space<vmem>>, vector<1x32xf32>
    %23 = vector.broadcast %22 : vector<1x32xf32> to vector<8x32xf32>
    %24 = arith.addf %21, %23 : vector<8x32xf32>
    %c0_11 = arith.constant 0 : index
    %c0_12 = arith.constant 0 : index
    %25 = vector.load %arg5[%c0_11, %c0_12] : memref<8x32xf32, #tpu.memory_space<vmem>>, vector<8x32xf32>
    tpu.vector_store %arg5[%c0_11, %c0_12], %24 {strides = array<i32>} : memref<8x32xf32, #tpu.memory_space<vmem>>, vector<8x32xf32>,
    return
  }
  func.func @transform_0(%arg0: i32) -> (i32, i32) {
    %c0_i32 = arith.constant 0 : i32
    %c0_i32_0 = arith.constant 0 : i32
    return %arg0, %c0_i32 : i32, i32
  }
  func.func @transform_1(%arg0: i32) -> (i32, i32) {
    %c0_i32 = arith.constant 0 : i32
    %c0_i32_0 = arith.constant 0 : i32
    %c0_i32_1 = arith.constant 0 : i32
    return %c0_i32, %c0_i32_0 : i32, i32
  }
  func.func @transform_2(%arg0: i32) -> (i32, i32) {
    %c0_i32 = arith.constant 0 : i32
    %c0_i32_0 = arith.constant 0 : i32
    %c0_i32_1 = arith.constant 0 : i32
    return %c0_i32, %c0_i32_0 : i32, i32
  }
  func.func @transform_3(%arg0: i32) -> (i32, i32) {
    %c0_i32 = arith.constant 0 : i32
    %c0_i32_0 = arith.constant 0 : i32
    %c0_i32_1 = arith.constant 0 : i32
    return %c0_i32, %c0_i32_0 : i32, i32
  }
  func.func @transform_4(%arg0: i32) -> (i32, i32) {
    %c0_i32 = arith.constant 0 : i32
    %c0_i32_0 = arith.constant 0 : i32
    return %arg0, %c0_i32 : i32, i32
  }
}

</mosaic_0001>

<llo_original>
// kernel: tpu_custom_call.1
$region0: #{tpu_custom_call.1}
  #allocation0 [shape = 'u32[]', space=smem, size = 0x4, offset = 0x4, fixed_abs, tag = 'smem constant byte address 0x4 - core index']
  #allocation1 [shape = 'u32[72,128]{1,0:T(1,128)}', space=vmem, size = 0x9000, scoped, tag = 'internal scratch']
  %s0 = inlined_call_operand.hbm [shape: f32[16,32], index: 0, kind: input, shape index: {}]
  %s1 = inlined_call_operand.hbm [shape: f32[8,32], index: 1, kind: input, shape index: {}]
  %s2 = inlined_call_operand.vmem [shape: f32[1,32], index: 2, kind: input, shape index: {}]
  %s3 = inlined_call_operand.vmem [shape: f32[1,32], index: 3, kind: input, shape index: {}]
  %s4 = inlined_call_operand.hbm [shape: f32[16,32], index: 4, kind: output, shape index: {}]
  %s5 = sld [smem:[#allocation0]]
  $region57: #{tpu_custom_call.1} parent=0
    _
  %s7 = ssub.s32 1, %s5
  %s8 = scalar_select 0, %s7, %s5
  $region1: #{tpu_custom_call.1} parent=0
    #allocation2 [shape = 'u8[8192]{0}', space=vmem, size = 0x2000, scoped, tag = 'input window, operand 0']
    #allocation3 [shape = 's32[2]{0}', space=sflag, size = 0x8, scoped, tag = 'scoped memory for tpu_custom_call.1']
    #allocation4 [shape = 's32[2]{0}', space=sflag, size = 0x8, scoped, tag = 'scoped memory for tpu_custom_call.1']
    #allocation5 [shape = 'u8[4096]{0}', space=vmem, size = 0x1000, scoped, tag = 'input window, operand 1, single buffered']
    #allocation6 [shape = 's32[1]{0}', space=sflag, size = 0x4, scoped, tag = 'scoped memory for tpu_custom_call.1']
    #allocation7 [shape = 'u8[8192]{0}', space=vmem, size = 0x2000, scoped, tag = 'output window, operand 0']
    %9 = vsyncpa [#allocation3], 0
    %s10 = scalar_lea.sflag [#allocation3], 1
    %11 = vsyncpa %s10, 0
    %12 = vsyncpa [#allocation6], 0
    %13 = vsyncpa [#allocation4], 0
    %s14 = scalar_lea.sflag [#allocation4], 1
    %15 = vsyncpa %s14, 0
    loop: start=0, step=1, limit=4
    $region2: #{tpu_custom_call.1} parent=1 // loop_pre_header
      _
    $region3: #{tpu_custom_call.1} parent=1 // loop_header
      %s17 = sphi 0, %s21
      %p18 = scmp.ge.s32.totalorder %s17, 4
      %s27 = sphi 0, %s29
      %s30 = sphi 0, %s27
      %s31 = sphi 0, %s30
      %s47 = sphi 0, %s31
      %s51 = sphi 0, %s51
      %s53 = sphi 0, %s51
      %s54 = sphi 0, %s53
      %s68 = sphi 0, %s54
      %s72 = sphi 0, %s72
      %s74 = sphi 0, %s72
      %s75 = sphi 0, %s74
      %s89 = sphi 0, %s75
      %s93 = sphi 0, %s93
      %s95 = sphi 0, %s93
      %s96 = sphi 0, %s95
      %s110 = sphi 0, %s96
      %s116 = sphi 0, %s118
      %s119 = sphi 0, %s116
      %s120 = sphi 0, %s119
      %s136 = sphi 0, %s120
    $region4: #{tpu_custom_call.1} parent=1 // loop_header_branch
      %20 = sbr.rel (%p18) target = $region8
    $region5: #{tpu_custom_call.1} parent=1 // loop_body
      %s22 = ssub.s32 %s17, 1
      %s23 = ssub.s32 %s17, 2
      %s24 = sadd.s32 %s17, 1
      %s25 = ssub.s32 %s17, %s24
      %p26 = scmp.eq.s32.totalorder %s25, 0
      %s28 = sadd.s32 %s27, 1
      %s29 = scalar_select %p26, %s27, %s28
      %p32 = pneg %p26
      %p33 = scmp.eq.s32.totalorder %s17, 1
      %p34 = por %p32, %p33
      %p35 = scmp.ne.s32.totalorder %s27, %s30
      %p36 = scmp.eq.s32.totalorder %s17, 0
      %p37 = por %p35, %p36
      %p38 = scmp.ne.s32.totalorder %s27, %s30
      %p39 = scmp.eq.s32.totalorder %s22, 1
      %p40 = por %p38, %p39
      %p41 = scmp.ne.s32.totalorder %s30, %s31
      %p42 = scmp.eq.s32.totalorder %s22, 0
      %p43 = por %p41, %p42
      %p44 = scmp.ne.s32.totalorder %s30, %s31
      %p45 = scmp.eq.s32.totalorder %s23, 1
      %p46 = por %p44, %p45
      %p48 = scmp.ne.s32.totalorder %s31, %s47
      %p49 = scmp.eq.s32.totalorder %s23, 0
      %p50 = por %p48, %p49
      %s52 = sadd.s32 %s51, 1
      %p55 = scmp.eq.s32.totalorder %s17, 1
      %p56 = scmp.ne.s32.totalorder %s51, %s53
      %p57 = scmp.eq.s32.totalorder %s17, 0
      %p58 = por %p56, %p57
      %p59 = scmp.ne.s32.totalorder %s51, %s53
      %p60 = scmp.eq.s32.totalorder %s22, 1
      %p61 = por %p59, %p60
      %p62 = scmp.ne.s32.totalorder %s53, %s54
      %p63 = scmp.eq.s32.totalorder %s22, 0
      %p64 = por %p62, %p63
      %p65 = scmp.ne.s32.totalorder %s53, %s54
      %p66 = scmp.eq.s32.totalorder %s23, 1
      %p67 = por %p65, %p66
      %p69 = scmp.ne.s32.totalorder %s54, %s68
      %p70 = scmp.eq.s32.totalorder %s23, 0
      %p71 = por %p69, %p70
      %s73 = sadd.s32 %s72, 1
      %p76 = scmp.eq.s32.totalorder %s17, 1
      %p77 = scmp.ne.s32.totalorder %s72, %s74
      %p78 = scmp.eq.s32.totalorder %s17, 0
      %p79 = por %p77, %p78
      %p80 = scmp.ne.s32.totalorder %s72, %s74
      %p81 = scmp.eq.s32.totalorder %s22, 1
      %p82 = por %p80, %p81
      %p83 = scmp.ne.s32.totalorder %s74, %s75
      %p84 = scmp.eq.s32.totalorder %s22, 0
      %p85 = por %p83, %p84
      %p86 = scmp.ne.s32.totalorder %s74, %s75
      %p87 = scmp.eq.s32.totalorder %s23, 1
      %p88 = por %p86, %p87
      %p90 = scmp.ne.s32.totalorder %s75, %s89
      %p91 = scmp.eq.s32.totalorder %s23, 0
      %p92 = por %p90, %p91
      %s94 = sadd.s32 %s93, 1
      %p97 = scmp.eq.s32.totalorder %s17, 1
      %p98 = scmp.ne.s32.totalorder %s93, %s95
      %p99 = scmp.eq.s32.totalorder %s17, 0
      %p100 = por %p98, %p99
      %p101 = scmp.ne.s32.totalorder %s93, %s95
      %p102 = scmp.eq.s32.totalorder %s22, 1
      %p103 = por %p101, %p102
      %p104 = scmp.ne.s32.totalorder %s95, %s96
      %p105 = scmp.eq.s32.totalorder %s22, 0
      %p106 = por %p104, %p105
      %p107 = scmp.ne.s32.totalorder %s95, %s96
      %p108 = scmp.eq.s32.totalorder %s23, 1
      %p109 = por %p107, %p108
      %p111 = scmp.ne.s32.totalorder %s96, %s110
      %p112 = scmp.eq.s32.totalorder %s23, 0
      %p113 = por %p111, %p112
      %s114 = ssub.s32 %s17, %s24
      %p115 = scmp.eq.s32.totalorder %s114, 0
      %s117 = sadd.s32 %s116, 1
      %s118 = scalar_select %p115, %s116, %s117
      %p121 = pneg %p115
      %p122 = scmp.eq.s32.totalorder %s17, 1
      %p123 = por %p121, %p122
      %p124 = scmp.ne.s32.totalorder %s116, %s119
      %p125 = scmp.eq.s32.totalorder %s17, 0
      %p126 = por %p124, %p125
      %p127 = scmp.ne.s32.totalorder %s116, %s119
      %p128 = scmp.eq.s32.totalorder %s22, 1
      %p129 = por %p127, %p128
      %p130 = scmp.ne.s32.totalorder %s119, %s120
      %p131 = scmp.eq.s32.totalorder %s22, 0
      %p132 = por %p130, %p131
      %p133 = scmp.ne.s32.totalorder %s119, %s120
      %p134 = scmp.eq.s32.totalorder %s23, 1
      %p135 = por %p133, %p134
      %p137 = scmp.ne.s32.totalorder %s120, %s136
      %p138 = scmp.eq.s32.totalorder %s23, 0
      %p139 = por %p137, %p138
      %p140 = scmp.le.s32.totalorder 1, %s17
      %p141 = scmp.lt.s32.totalorder %s17, 3
      %p142 = pnand %p140, %p141
      %p143 = pneg %p142
      // Predicated region
      $region9: #{tpu_custom_call.1} parent=5 // pred_check
        _
      $region10: #{tpu_custom_call.1} parent=5 // pred_check_branch
        %145 = sbr.rel (%p142) target = $region12
      $region11: #{tpu_custom_call.1} parent=5 // pred_region
        %s146 = ssub.s32 %s17, 1
        // Predicated region
        $region13: #{tpu_custom_call.1} parent=11 // pred_check
          %p147 = pneg %p64
        $region14: #{tpu_custom_call.1} parent=11 // pred_check_branch
          %149 = sbr.rel (%p147) target = $region16
        $region15: #{tpu_custom_call.1} parent=11 // pred_region
          %151 = vsyncadd [#allocation6], 0
          %s153 = sshll.u32 %s1, 4
          %s154 = int_to_ptr.hbm [resolvable:$true] %s153
          %s155 = sshll.u32 [#allocation5], 4
          %s156 = int_to_ptr.vmem [resolvable:$true] %s155
          %158 = dma.hbm_to_vmem [thread:$0]  %s154, 128, %s156, [#allocation6]
        $region16: #{tpu_custom_call.1} parent=11 // pred_fallthru
          _
        // Predicated region
        $region17: #{tpu_custom_call.1} parent=11 // pred_check
          %p159 = pneg %p85
        $region18: #{tpu_custom_call.1} parent=11 // pred_check_branch
          %161 = sbr.rel (%p159) target = $region20
        $region19: #{tpu_custom_call.1} parent=11 // pred_region
          _
        $region20: #{tpu_custom_call.1} parent=11 // pred_fallthru
          _
        // Predicated region
        $region21: #{tpu_custom_call.1} parent=11 // pred_check
          %p162 = pneg %p106
        $region22: #{tpu_custom_call.1} parent=11 // pred_check_branch
          %164 = sbr.rel (%p162) target = $region24
        $region23: #{tpu_custom_call.1} parent=11 // pred_region
          _
        $region24: #{tpu_custom_call.1} parent=11 // pred_fallthru
          _
      $region12: #{tpu_custom_call.1} parent=5 // pred_fallthru
        _
      %p165 = scmp.lt.s32.totalorder %s17, 2
      // Predicated region
      $region25: #{tpu_custom_call.1} parent=5 // pred_check
        %p166 = pneg %p165
      $region26: #{tpu_custom_call.1} parent=5 // pred_check_branch
        %168 = sbr.rel (%p166) target = $region28
      $region27: #{tpu_custom_call.1} parent=5 // pred_region
        // Predicated region
        $region29: #{tpu_custom_call.1} parent=27 // pred_check
          %p169 = pneg %p37
        $region30: #{tpu_custom_call.1} parent=27 // pred_check_branch
          %171 = sbr.rel (%p169) target = $region32
        $region31: #{tpu_custom_call.1} parent=27 // pred_region
          %s172 = sand.u32 %s27, 1
          %s173 = scalar_lea.sflag [#allocation3], %s172
          %s174 = sand.u32 %s27, 1
          %s175 = smul.addr %s174, 8
          %s176 = scalar_lea.vmem [#allocation2], %s175
          %178 = vsyncadd %s173, 0
          %s179 = smul.addr %s17, 8
          %s180 = scalar_lea.hbm %s0, %s179
          %s182 = sshll.u32 %s180, 4
          %s183 = int_to_ptr.hbm [resolvable:$true] %s182
          %s184 = sshll.u32 %s176, 4
          %s185 = int_to_ptr.vmem [resolvable:$true] %s184
          %187 = dma.hbm_to_vmem [thread:$0]  %s183, 128, %s185, %s173
        $region32: #{tpu_custom_call.1} parent=27 // pred_fallthru
          _
      $region28: #{tpu_custom_call.1} parent=5 // pred_fallthru
        _
      %p188 = scmp.le.s32.totalorder 1, %s17
      %p189 = scmp.lt.s32.totalorder %s17, 3
      %p190 = pnand %p188, %p189
      %p191 = pneg %p190
      // Predicated region
      $region33: #{tpu_custom_call.1} parent=5 // pred_check
        _
      $region34: #{tpu_custom_call.1} parent=5 // pred_check_branch
        %193 = sbr.rel (%p190) target = $region36
      $region35: #{tpu_custom_call.1} parent=5 // pred_region
        %s194 = ssub.s32 %s17, 1
        %s195 = sand.u32 %s30, 1
        %s196 = scalar_lea.sflag [#allocation3], %s195
        %s197 = sand.u32 %s30, 1
        %s198 = smul.addr %s197, 8
        %s199 = scalar_lea.vmem [#allocation2], %s198
        // Predicated region
        $region37: #{tpu_custom_call.1} parent=35 // pred_check
          %p200 = pneg %p43
        $region38: #{tpu_custom_call.1} parent=35 // pred_check_branch
          %202 = sbr.rel (%p200) target = $region40
        $region39: #{tpu_custom_call.1} parent=35 // pred_region
          %204 = dma.done %s196, 128
        $region40: #{tpu_custom_call.1} parent=35 // pred_fallthru
          _
        // Predicated region
        $region41: #{tpu_custom_call.1} parent=35 // pred_check
          %p205 = pneg %p64
        $region42: #{tpu_custom_call.1} parent=35 // pred_check_branch
          %207 = sbr.rel (%p205) target = $region44
        $region43: #{tpu_custom_call.1} parent=35 // pred_region
          %209 = dma.done [#allocation6], 128
        $region44: #{tpu_custom_call.1} parent=35 // pred_fallthru
          _
        %s210 = sand.u32 %s30, 1
        %s211 = scalar_lea.sflag [#allocation3], %s210
        %s212 = sand.u32 %s30, 1
        %s213 = smul.addr %s212, 8
        %s214 = scalar_lea.vmem [#allocation2], %s213
        %p215 = pneg %p43
        %p216 = pneg %p40
        %p217 = pneg %p64
        %p218 = pneg %p61
        %p219 = pneg %p85
        %p220 = pneg %p82
        %p221 = pneg %p106
        %p222 = pneg %p103
        %p223 = pneg %p132
        %p224 = pneg %p129
        %s225 = sand.u32 %s119, 1
        %s226 = scalar_lea.sflag [#allocation4], %s225
        %s227 = sand.u32 %s119, 1
        %s228 = smul.addr %s227, 8
        %s229 = scalar_lea.vmem [#allocation7], %s228
        %v230 = vld [vmem:[%s199] sm:$0xff]
        %v231 = vld [vmem:[#allocation5] sm:$0xff]
        %v232 = vadd.f32 %v230, %v231
        %vm233 = vcmask 261120
        %v234 = vsel %vm233, %v232, 0.0
        %235 = vadd.xlane.f32.xlu0 %v234
        %v236 = vpop.xlane.xlu0 %235
        %v237 = vrcp.pop 32.0
        %v238 = vmul.f32 32.0, %v237
        %v239 = vsub.f32 1.0, %v238
        %v240 = vmul.f32 %v237, %v239
        %v241 = vadd.f32 %v237, %v240
        %vm242 = vweird.f32 %v237
        %v243 = vsel %vm242, %v237, %v241
        %v244 = vmul.f32 %v236, %v243
        %v245 = vsub.f32 %v232, %v244
        %v246 = vmul.f32 %v245, %v245
        %v247 = vsel %vm233, %v246, 0.0
        %248 = vadd.xlane.f32.xlu0 %v247
        %v249 = vpop.xlane.xlu0 %248
        %v250 = vmul.f32 %v249, 0.032258064
        %v251 = vrsqrt.pop %v250
        %v252 = vmul.f32 %v251, %v250
        %v253 = vmul.f32 %v252, %v251
        %v254 = vmul.f32 0.5, %v253
        %v255 = vsub.f32 1.5, %v254
        %v256 = vmul.f32 %v251, %v255
        %v257 = vmul.f32 %v250, %v256
        %vm258 = vcmp.eq.f32.partialorder %v250, inf
        %v259 = vsel %vm258, %v250, %v257
        %vm260 = vcmp.eq.f32.partialorder %v250, 0.0
        %v261 = vand.u32 %v250, 2147483648
        %v262 = vsel %vm260, %v261, %v259
        %v263 = vadd.f32 %v262, 1e-06
        %v264 = vrcp.pop %v263
        %v265 = vmul.f32 %v263, %v264
        %v266 = vsub.f32 1.0, %v265
        %v267 = vmul.f32 %v264, %v266
        %v268 = vadd.f32 %v264, %v267
        %vm269 = vweird.f32 %v263
        %vm270 = vweird.f32 %v264
        %vm271 = vmor %vm269, %vm270
        %v272 = vsel %vm271, %v264, %v268
        %v273 = vand.u32 2147483647, %v263
        %vm274 = vcmp.eq.f32.partialorder %v273, 8.507059e+37
        %v275 = vand.u32 %v263, 2147483648
        %v276 = vor.u32 1.1754944e-38, %v275
        %v277 = vsel %vm274, %v276, %v272
        %v278 = vmul.f32 %v245, %v277
        %v279 = vld [vmem:[%s2] sm:$0x1]
        %v281 = vperm.slane %v279, 0
        %v283 = vmul.f32 %v281, %v278
        %v284 = vld [vmem:[%s3] sm:$0x1]
        %v286 = vperm.slane %v284, 0
        %v288 = vadd.f32 %v283, %v286
        %289 = vst.msk [vmem:[%s229] sm:$0xff] %vm233, %v288
        %s290 = sand.u32 %s119, 1
        %s291 = scalar_lea.sflag [#allocation4], %s290
        %s292 = sand.u32 %s119, 1
        %s293 = smul.addr %s292, 8
        %s294 = scalar_lea.vmem [#allocation7], %s293
        // Predicated region
        $region45: #{tpu_custom_call.1} parent=35 // pred_check
          %p295 = pneg %p129
        $region46: #{tpu_custom_call.1} parent=35 // pred_check_branch
          %297 = sbr.rel (%p295) target = $region48
        $region47: #{tpu_custom_call.1} parent=35 // pred_region
          %299 = vsyncadd %s291, 0
          %s300 = smul.addr %s22, 8
          %s301 = scalar_lea.hbm %s4, %s300
          %s303 = sshll.u32 %s294, 4
          %s304 = int_to_ptr.vmem [resolvable:$true] %s303
          %s305 = sshll.u32 %s301, 4
          %s306 = int_to_ptr.hbm [resolvable:$true] %s305
          %308 = dma.vmem_to_hbm [thread:$0]  %s304, 128, %s306, %s291
        $region48: #{tpu_custom_call.1} parent=35 // pred_fallthru
          _
      $region36: #{tpu_custom_call.1} parent=5 // pred_fallthru
        _
      %p309 = scmp.le.s32.totalorder 2, %s17
      // Predicated region
      $region49: #{tpu_custom_call.1} parent=5 // pred_check
        %p310 = pneg %p309
      $region50: #{tpu_custom_call.1} parent=5 // pred_check_branch
        %312 = sbr.rel (%p310) target = $region52
      $region51: #{tpu_custom_call.1} parent=5 // pred_region
        %s313 = ssub.s32 %s17, 2
        // Predicated region
        $region53: #{tpu_custom_call.1} parent=51 // pred_check
          %p314 = pneg %p135
        $region54: #{tpu_custom_call.1} parent=51 // pred_check_branch
          %316 = sbr.rel (%p314) target = $region56
        $region55: #{tpu_custom_call.1} parent=51 // pred_region
          %s317 = sand.u32 %s120, 1
          %s318 = scalar_lea.sflag [#allocation4], %s317
          %s319 = sand.u32 %s120, 1
          %s320 = smul.addr %s319, 8
          %s321 = scalar_lea.vmem [#allocation7], %s320
          %323 = dma.done %s318, 128
        $region56: #{tpu_custom_call.1} parent=51 // pred_fallthru
          _
      $region52: #{tpu_custom_call.1} parent=5 // pred_fallthru
        _
    $region6: #{tpu_custom_call.1} parent=1 // loop_footer
      %s21 = sadd.s32 1, %s17
    $region7: #{tpu_custom_call.1} parent=1 // loop_footer_branch
      %16 = sbr.rel target = $region3
    $region8: #{tpu_custom_call.1} parent=1 // loop_exit
      _
    %324 = vsyncpa [#allocation3], 1
    %s325 = scalar_lea.sflag [#allocation3], 1
    %326 = vsyncpa %s325, 1
    %327 = vsyncpa [#allocation6], 1
    %328 = vsyncpa [#allocation4], 1
    %s329 = scalar_lea.sflag [#allocation4], 1
    %330 = vsyncpa %s329, 1

</llo_original>
